<compile_context>
chip_gen: v5e
topology: v5e:2x2
jax: 0.10.0
libtpu: 0.0.40
codegen_flags: <defaults>
</compile_context>

<pallas_src>
import functools

import jax
import jax.numpy as jnp
from jax.experimental import pallas as pl
from jax.experimental.pallas import tpu as pltpu


def _round_up(x, m):
    return ((x + m - 1) // m) * m


def _largest_tile(n_pad, cap):
    """Largest multiple of 128 that divides n_pad and is <= min(n_pad, cap)."""
    cap = max(128, int(cap))
    best, t, limit = 128, 128, min(n_pad, cap)
    while t <= limit:
        if n_pad % t == 0:
            best = t
        t += 128
    return best


def _vmem_usable_bytes():
    """Per-generation VMEM budget with headroom for Mosaic internal scratch.

    ~52 MiB of v7x's 64 MiB per TensorCore, ~104 MiB of v5e/v6e's 128 MiB.
    """
    cap = 64 * 1024 * 1024
    try:
        cap = int(pltpu.get_tpu_info().vmem_capacity_bytes)
    except Exception:
        pass
    return max(min(cap - (12 << 20), int(cap * 0.82)), 32 << 20)


# --------------------------- fused multi-layer kernel ------------------------

def _fused_gnn_kernel(a_ref, h0_ref, w_ref, b_ref, o_ref, acc_ref, h_scr_ref,
                      *, tm, tk, n_pad, n_layers, n_k, a_resident):
    """Grid = (layer l, dst-row tile i, contraction tile k), k innermost."""
    l = pl.program_id(0)
    i = pl.program_id(1)
    k = pl.program_id(2)

    # Ping-pong feature scratch: layer l writes rows [write_slot*n_pad, ...),
    # reads the other half (which holds layer l-1's full output).
    write_slot = l % 2
    read_slot = 1 - write_slot
    k_off = pl.multiple_of(read_slot * n_pad + k * tk, tk)
    i_off = pl.multiple_of(write_slot * n_pad + i * tm, tm)

    # Layer 0: stage the initial node embeddings into the "read" half of the
    # scratch.  Happens once, while i == 0 sweeps every k block (k is the
    # innermost grid axis, so each block is written before it is consumed).
    @pl.when(jnp.logical_and(l == 0, i == 0))
    def _():
        h_scr_ref[pl.ds(k_off, tk), :] = h0_ref[...].astype(h_scr_ref.dtype)

    if a_resident:
        # A is VMEM-resident for the whole grid; slice the (tm, tk) row band.
        a_blk = a_ref[pl.ds(pl.multiple_of(i * tm, tm), tm), :]
    else:
        a_blk = a_ref[...]
    h_blk = h_scr_ref[pl.ds(k_off, tk), :]

    # Aggregation: A_norm[i-tile, k-tile] @ h[k-tile]   (MXU, f32 accumulate).
    part = jnp.dot(a_blk, h_blk, preferred_element_type=jnp.float32)

    if n_k > 1:
        @pl.when(k == 0)
        def _():
            acc_ref[...] = jnp.zeros_like(acc_ref)
        acc_ref[...] += part

    # Epilogue for this row tile: weight + bias, stash into the "write" half of
    # the scratch for the next layer; only the final layer writes HBM output.
    @pl.when(k == n_k - 1)
    def _():
        agg = part if n_k == 1 else acc_ref[...]
        out = jnp.dot(agg.astype(w_ref.dtype), w_ref[0],
                      preferred_element_type=jnp.float32)
        out = out + b_ref[0]          # bias add in f32 (exact, VPU-cheap)

        @pl.when(l < n_layers - 1)
        def _():
            h_scr_ref[pl.ds(i_off, tm), :] = out.astype(h_scr_ref.dtype)

        @pl.when(l == n_layers - 1)
        def _():
            o_ref[...] = out.astype(o_ref.dtype)


def _fused_call(a_pad, h_pad, w_pad, b_pad, *, tm, tk, n_pad, d_pad, n_layers,
                a_resident, out_dtype, cdt, vmem_limit):
    n_i = n_pad // tm
    n_k = n_pad // tk
    kernel = functools.partial(_fused_gnn_kernel, tm=tm, tk=tk, n_pad=n_pad,
                               n_layers=n_layers, n_k=n_k,
                               a_resident=a_resident)

    if a_resident:
        # Full-array block, constant index map -> A DMA'd from HBM exactly once
        # and kept resident across all layers / row tiles.
        a_spec = pl.BlockSpec((n_pad, n_pad), lambda l, i, k: (0, 0))
    else:
        # Streamed (tm, tk) tiles.  (pipeline_mode=pl.Buffered(3) could be
        # added here if the A DMA is still exposed for very small d_pad.)
        a_spec = pl.BlockSpec((tm, tk), lambda l, i, k: (i, k))

    # h0 is only read during the (l==0, i==0) staging sweep; pin the block
    # index everywhere else so it is never re-fetched.
    h0_spec = pl.BlockSpec(
        (tk, d_pad),
        lambda l, i, k: (jnp.where(jnp.logical_and(l == 0, i == 0), k, 0), 0))

    # Output block index pinned for non-final layers: only the final layer's
    # valid row tiles are ever written back to HBM (n_i writebacks total).
    out_spec = pl.BlockSpec(
        (tm, d_pad),
        lambda l, i, k: (jnp.where(l == n_layers - 1, i, 0), 0))

    return pl.pallas_call(
        kernel,
        out_shape=jax.ShapeDtypeStruct((n_pad, d_pad), out_dtype),
        grid_spec=pltpu.PrefetchScalarGridSpec(
            num_scalar_prefetch=0,
            grid=(n_layers, n_i, n_k),
            in_specs=[
                a_spec,
                h0_spec,
                # Per-layer weight / bias, resident across the (i, k) sweep.
                pl.BlockSpec((1, d_pad, d_pad), lambda l, i, k: (l, 0, 0)),
                pl.BlockSpec((1, 1, d_pad), lambda l, i, k: (l, 0, 0)),
            ],
            out_specs=out_spec,
            scratch_shapes=[
                pltpu.VMEM((tm, d_pad), jnp.float32),   # aggregation acc
                pltpu.VMEM((2 * n_pad, d_pad), cdt),    # ping-pong features
            ],
        ),
        compiler_params=pltpu.CompilerParams(
            # Everything is serially dependent through the core-local scratch
            # (layer l+1 needs ALL rows of layer l), so every axis stays
            # sequential on one core.
            dimension_semantics=("arbitrary", "arbitrary", "arbitrary"),
            vmem_limit_bytes=vmem_limit,
        ),
    )(a_pad, h_pad, w_pad, b_pad)


# --------------------------- per-layer fallback -------------------------------

def _layer_kernel(a_ref, h_ref, w_ref, b_ref, o_ref, acc_ref, *, n_k):
    k = pl.program_id(1)
    part = jnp.dot(a_ref[...], h_ref[...], preferred_element_type=jnp.float32)
    if n_k > 1:
        @pl.when(k == 0)
        def _():
            acc_ref[...] = jnp.zeros_like(acc_ref)
        acc_ref[...] += part

    @pl.when(k == n_k - 1)
    def _():
        agg = part if n_k == 1 else acc_ref[...]
        out = jnp.dot(agg.astype(w_ref.dtype), w_ref[...],
                      preferred_element_type=jnp.float32) + b_ref[...]
        o_ref[...] = out.astype(o_ref.dtype)


def _graphconv_layer(a_pad, h_pad, w_l, b_l, *, tm, tk, d_pad, out_dtype,
                     vmem_limit):
    n_pad = a_pad.shape[0]
    n_i, n_k = n_pad // tm, n_pad // tk
    kernel = functools.partial(_layer_kernel, n_k=n_k)
    return pl.pallas_call(
        kernel,
        out_shape=jax.ShapeDtypeStruct((n_pad, d_pad), out_dtype),
        grid_spec=pltpu.PrefetchScalarGridSpec(
            num_scalar_prefetch=0,
            grid=(n_i, n_k),
            in_specs=[
                pl.BlockSpec((tm, tk), lambda i, k: (i, k)),
                pl.BlockSpec((tk, d_pad), lambda i, k: (k, 0)),
                pl.BlockSpec((d_pad, d_pad), lambda i, k: (0, 0)),
                pl.BlockSpec((1, d_pad), lambda i, k: (0, 0)),
            ],
            out_specs=pl.BlockSpec((tm, d_pad), lambda i, k: (i, 0)),
            scratch_shapes=[pltpu.VMEM((tm, d_pad), jnp.float32)],
        ),
        compiler_params=pltpu.CompilerParams(
            # Row tiles are independent -> shard across v7x's two TensorCores.
            dimension_semantics=("parallel", "arbitrary"),
            vmem_limit_bytes=vmem_limit,
        ),
    )(a_pad, h_pad, w_l, b_l)


# --------------------------------- driver -------------------------------------

def gnn_pallas(a_norm, h0, w_stack, b_stack, *, compute_dtype=jnp.bfloat16,
               use_fused=True, force_a_resident=None, max_block_k=1024):
    """Runs the stacked GraphConv layers with Pallas TPU kernels.

    a_norm : (N, N) f32 dense normalized adjacency (D_in^-1/2 A^T D_out^-1/2).
    h0     : (N, D) node embeddings.
    w_stack: (L, D, D) layer weights.   b_stack: (L, D) layer biases.
    """
    n, d = h0.shape
    n_layers = w_stack.shape[0]
    assert a_norm.shape == (n, n)
    assert w_stack.shape == (n_layers, d, d)
    assert b_stack.shape == (n_layers, d)

    cdt = jnp.dtype(compute_dtype)
    itm = cdt.itemsize
    out_dtype = h0.dtype
    out_itm = jnp.dtype(out_dtype).itemsize

    d_pad = _round_up(d, 128)
    n_pad = _round_up(n, 128)
    tm = 256 if n_pad % 256 == 0 else 128
    tk_tiled = _largest_tile(n_pad, max_block_k)

    usable = _vmem_usable_bytes()

    # Zero-padded operands (zero pad rows/cols keep the math unchanged).
    a_pad = jnp.zeros((n_pad, n_pad), cdt).at[:n, :n].set(a_norm.astype(cdt))
    h_pad = jnp.zeros((n_pad, d_pad), cdt).at[:n, :d].set(h0.astype(cdt))
    w_pad = jnp.zeros((n_layers, d_pad, d_pad), cdt).at[:, :d, :d].set(
        w_stack.astype(cdt))
    b_pad = jnp.zeros((n_layers, 1, d_pad), jnp.float32).at[:, 0, :d].set(
        b_stack.astype(jnp.float32))

    # VMEM budgets (pipeline double-buffers each BlockSpec input/output).
    common = (2 * d_pad * d_pad * itm       # per-layer W
              + 2 * d_pad * 4               # per-layer bias (f32)
              + 2 * tm * d_pad * out_itm    # output tiles
              + tm * d_pad * 4              # f32 accumulator scratch
              + 2 * n_pad * d_pad * itm)    # ping-pong feature scratch
    resident_bytes = (common
                      + 2 * n_pad * n_pad * itm   # A full (conservative 2x)
                      + 2 * n_pad * d_pad * itm)  # h0 full block
    tiled_bytes = (common
                   + 2 * tm * tk_tiled * itm
                   + 2 * tk_tiled * d_pad * itm)

    a_resident = resident_bytes <= usable
    if force_a_resident is not None:
        a_resident = bool(force_a_resident) and a_resident
    fused_fits = a_resident or (tiled_bytes <= usable)

    if use_fused and fused_fits:
        tk = n_pad if a_resident else tk_tiled
        out_pad = _fused_call(a_pad, h_pad, w_pad, b_pad, tm=tm, tk=tk,
                              n_pad=n_pad, d_pad=d_pad, n_layers=n_layers,
                              a_resident=a_resident, out_dtype=out_dtype,
                              cdt=cdt, vmem_limit=usable)
    else:
        # Per-layer tiled path (always fits; also the v7x two-TensorCore path).
        h = h_pad
        for l in range(n_layers):
            layer_out = out_dtype if l == n_layers - 1 else cdt
            h = _graphconv_layer(a_pad, h, w_pad[l], b_pad[l], tm=tm,
                                 tk=tk_tiled, d_pad=d_pad, out_dtype=layer_out,
                                 vmem_limit=usable)
        out_pad = h

    return out_pad[:n, :d]


def build_normalized_adjacency(edge_matrix, num_nodes):
    """Dense D_in^{-1/2} A^T D_out^{-1/2} (dgl GraphConv norm='both'), f32."""
    src = edge_matrix[0]
    dst = edge_matrix[1]
    ones = jnp.ones(src.shape, jnp.float32)
    out_deg = jnp.zeros((num_nodes,), jnp.float32).at[src].add(ones)
    in_deg = jnp.zeros((num_nodes,), jnp.float32).at[dst].add(ones)
    norm_src = jax.lax.rsqrt(jnp.maximum(out_deg, 1.0))   # degs.clamp(min=1)
    norm_dst = jax.lax.rsqrt(jnp.maximum(in_deg, 1.0))
    adj = jnp.zeros((num_nodes, num_nodes), jnp.float32).at[dst, src].add(ones)
    return norm_dst[:, None] * adj * norm_src[None, :]


def init_gnn_params(key, h_dim, n_conv_layers):
    """Deterministic xavier-uniform weights + zero biases, stacked per layer."""
    bound = (6.0 / (h_dim + h_dim)) ** 0.5
    ws, bs = [], []
    for i in range(n_conv_layers):
        k = jax.random.fold_in(key, i)
        ws.append(jax.random.uniform(k, (h_dim, h_dim), jnp.float32,
                                     -bound, bound))
        bs.append(jnp.zeros((h_dim,), jnp.float32))
    return jnp.stack(ws), jnp.stack(bs)


@functools.partial(jax.jit, static_argnames=("compute_dtype", "use_fused",
                                             "force_a_resident", "max_block_k"))
def gnn_forward(node_embeddings, edge_matrix, w_stack, b_stack, *,
                compute_dtype=jnp.bfloat16, use_fused=True,
                force_a_resident=None, max_block_k=1024):
    """GNN.forward for gnn_class=GraphConv: stacked conv layers, no activation.

    edge_labels_or_dummynode_ids is unused by GraphConv layers (it only feeds
    RelGraphConv), so it is not an argument here.
    """
    num_nodes = node_embeddings.shape[0]
    a_norm = build_normalized_adjacency(edge_matrix, num_nodes)
    return gnn_pallas(a_norm, node_embeddings, w_stack, b_stack,
                      compute_dtype=compute_dtype, use_fused=use_fused,
                      force_a_resident=force_a_resident,
                      max_block_k=max_block_k)


def gnn_reference(node_embeddings, edge_matrix, w_stack, b_stack,
                  compute_dtype=jnp.float32):
    """Pure-JAX reference that mirrors the kernel's dtype handling."""
    cdt = jnp.dtype(compute_dtype)
    a = build_normalized_adjacency(
        edge_matrix, node_embeddings.shape[0]).astype(cdt)
    h = node_embeddings.astype(cdt)
    w = w_stack.astype(cdt)
    b = b_stack.astype(jnp.float32)
    n_layers = w_stack.shape[0]
    for l in range(n_layers):
        agg = jnp.dot(a, h, preferred_element_type=jnp.float32)
        out = jnp.dot(agg.astype(cdt), w[l],
                      preferred_element_type=jnp.float32) + b[l]
        h = out.astype(cdt) if l < n_layers - 1 else out.astype(
            node_embeddings.dtype)
    return h


if __name__ == "__main__":
    def make_graph(key, n, emb):
        k_emb, k_e = jax.random.split(key)
        node_embeddings = jax.random.normal(k_emb, (n, emb), jnp.float32)
        # Ring (guarantees every node id appears, matching the module's
        # asserts) plus some random extras (multi-edges allowed).
        ring_src = jnp.arange(n, dtype=jnp.int32)
        ring_dst = (ring_src + 1) % n
        extra_src = jax.random.randint(jax.random.fold_in(k_e, 0), (8,), 0, n,
                                       jnp.int32)
        extra_dst = jax.random.randint(jax.random.fold_in(k_e, 1), (8,), 0, n,
                                       jnp.int32)
        edge_matrix = jnp.stack(
            [jnp.concatenate([ring_src, extra_src]),
             jnp.concatenate([ring_dst, extra_dst])], axis=0)
        return node_embeddings, edge_matrix

    N = 16            # num_nodes
    EMB = 32          # embedding_dim == h_dim (default h_dim=None)
    N_LAYERS = 2      # module arg -> self.n_layers = 2 * n_layers = 4 layers
    N_CONV = 2 * N_LAYERS

    key = jax.random.PRNGKey(0)
    k_g, k_p, k_g2 = jax.random.split(key, 3)

    node_embeddings, edge_matrix = make_graph(k_g, N, EMB)
    # Host-side module assertions (mirroring forward()'s asserts).
    assert int(edge_matrix.min()) >= 0
    assert int(edge_matrix.max()) == N - 1

    w_stack, b_stack = init_gnn_params(k_p, EMB, N_CONV)

    ref_f32 = gnn_reference(node_embeddings, edge_matrix, w_stack, b_stack,
                            jnp.float32)
    ref_bf16 = gnn_reference(node_embeddings, edge_matrix, w_stack, b_stack,
                             jnp.bfloat16)

    # 1) Default path: fused, bf16 compute, VMEM-resident adjacency.
    out = jax.block_until_ready(
        gnn_forward(node_embeddings, edge_matrix, w_stack, b_stack))
    assert out.shape == (N, EMB) and out.dtype == jnp.float32
    assert bool(jnp.all(jnp.isfinite(out)))
    assert bool(jnp.allclose(out, ref_bf16, rtol=2e-2, atol=2e-2))
    assert bool(jnp.allclose(out, ref_f32, rtol=2e-1, atol=2e-1))

    # 2) f32 compute path (exact path, looser tol only for MXU f32 rounding).
    out_f32 = jax.block_until_ready(
        gnn_forward(node_embeddings, edge_matrix, w_stack, b_stack,
                    compute_dtype=jnp.float32))
    assert bool(jnp.allclose(out_f32, ref_f32, rtol=5e-2, atol=5e-2))

    # 3) Per-layer fallback (the v7x two-TensorCore path).
    out_fb = jax.block_until_ready(
        gnn_forward(node_embeddings, edge_matrix, w_stack, b_stack,
                    use_fused=False))
    assert bool(jnp.allclose(out_fb, ref_bf16, rtol=2e-2, atol=2e-2))

    # 4) Larger graph forcing the streamed-A fused path with a multi-step
    #    contraction (exercises the accumulator branch).
    N2 = 304
    node_embeddings2, edge_matrix2 = make_graph(k_g2, N2, EMB)
    assert int(edge_matrix2.min()) >= 0 and int(edge_matrix2.max()) == N2 - 1
    ref2_bf16 = gnn_reference(node_embeddings2, edge_matrix2, w_stack, b_stack,
                              jnp.bfloat16)
    out2 = jax.block_until_ready(
        gnn_forward(node_embeddings2, edge_matrix2, w_stack, b_stack,
                    force_a_resident=False, max_block_k=128))
    assert out2.shape == (N2, EMB)
    assert bool(jnp.all(jnp.isfinite(out2)))
    assert bool(jnp.allclose(out2, ref2_bf16, rtol=2e-2, atol=2e-2))

    print("KERNEL_OK")
</pallas_src>

<mosaic_0001>
module attributes {stable_mosaic.version = 11 : i64} {
  func.func @_fused_gnn_kernel(%arg0: i32, %arg1: i32, %arg2: i32, %arg3: memref<128x128xbf16, #tpu.memory_space<vmem>>, %arg4: memref<128x128xbf16, #tpu.memory_space<vmem>>, %arg5: memref<1x128x128xbf16, #tpu.memory_space<vmem>>, %arg6: memref<1x1x128xf32, #tpu.memory_space<vmem>>, %arg7: memref<128x128xf32, #tpu.memory_space<vmem>>, %arg8: memref<128x128xf32, #tpu.memory_space<vmem>>, %arg9: memref<256x128xbf16, #tpu.memory_space<vmem>>) attributes {dimension_semantics = [#tpu.dimension_semantics<arbitrary>, #tpu.dimension_semantics<arbitrary>, #tpu.dimension_semantics<arbitrary>], iteration_bounds = array<i64: 4, 1, 1>, scalar_prefetch = 0 : i64, scratch_operands = 2 : i64, tpu.core_type = #tpu.core_type<tc>, window_params = [{pipeline_mode = #tpu.pipeline_mode<synchronous>, transform_indices = @transform_0, window_bounds = array<i64: 128, 128>}, {transform_indices = @transform_1, window_bounds = array<i64: 128, 128>}, {transform_indices = @transform_2, window_bounds = array<i64: 1, 128, 128>}, {transform_indices = @transform_3, window_bounds = array<i64: 1, 1, 128>}, {transform_indices = @transform_4, window_bounds = array<i64: 128, 128>}]} {
    %c2_i32 = arith.constant 2 : i32
    %c0_i32 = arith.constant 0 : i32
    %0 = arith.cmpi eq, %c2_i32, %c0_i32 : i32
    %c1_i32 = arith.constant 1 : i32
    %1 = arith.select %0, %c1_i32, %c2_i32 : i32
    %2 = arith.remsi %arg0, %1 : i32
    %c0_i32_0 = arith.constant 0 : i32
    %3 = arith.cmpi ne, %2, %c0_i32_0 : i32
    %c0_i32_1 = arith.constant 0 : i32
    %4 = arith.cmpi slt, %2, %c0_i32_1 : i32
    %c0_i32_2 = arith.constant 0 : i32
    %5 = arith.cmpi slt, %1, %c0_i32_2 : i32
    %6 = arith.xori %4, %5 : i1
    %7 = arith.andi %6, %3 : i1
    %8 = arith.addi %2, %1 : i32
    %9 = arith.select %7, %8, %2 : i32
    %c1_i32_3 = arith.constant 1 : i32
    %10 = arith.subi %c1_i32_3, %9 : i32
    %c128_i32 = arith.constant 128 : i32
    %11 = arith.muli %10, %c128_i32 : i32
    %c128_i32_4 = arith.constant 128 : i32
    %12 = arith.muli %arg2, %c128_i32_4 : i32
    %13 = arith.addi %11, %12 : i32
    %14 = tpu.assume_multiple %13, 128 : i32
    %c128_i32_5 = arith.constant 128 : i32
    %15 = arith.muli %9, %c128_i32_5 : i32
    %c128_i32_6 = arith.constant 128 : i32
    %16 = arith.muli %arg1, %c128_i32_6 : i32
    %17 = arith.addi %15, %16 : i32
    %18 = tpu.assume_multiple %17, 128 : i32
    %c0_i32_7 = arith.constant 0 : i32
    %19 = arith.cmpi eq, %arg0, %c0_i32_7 : i32
    %c0_i32_8 = arith.constant 0 : i32
    %20 = arith.cmpi eq, %arg1, %c0_i32_8 : i32
    %21 = arith.andi %19, %20 : i1
    %22 = arith.extui %21 : i1 to i32
    %c0_i32_9 = arith.constant 0 : i32
    %23 = arith.cmpi ne, %22, %c0_i32_9 : i32
    scf.if %23 {
      %c0_14 = arith.constant 0 : index
      %c0_15 = arith.constant 0 : index
      %34 = vector.load %arg4[%c0_14, %c0_15] : memref<128x128xbf16, #tpu.memory_space<vmem>>, vector<128x128xbf16>
      %35 = arith.index_cast %14 : i32 to index
      %c0_16 = arith.constant 0 : index
      %36 = vector.load %arg9[%35, %c0_16] : memref<256x128xbf16, #tpu.memory_space<vmem>>, vector<128x128xbf16>
      tpu.vector_store %arg9[%35, %c0_16], %34 {strides = array<i32>} : memref<256x128xbf16, #tpu.memory_space<vmem>>, vector<128x128xbf16>,
    } else {
    }
    %c128_i32_10 = arith.constant 128 : i32
    %24 = arith.muli %arg1, %c128_i32_10 : i32
    %25 = tpu.assume_multiple %24, 128 : i32
    %26 = arith.index_cast %25 : i32 to index
    %c0 = arith.constant 0 : index
    %27 = vector.load %arg3[%26, %c0] : memref<128x128xbf16, #tpu.memory_space<vmem>>, vector<128x128xbf16>
    %28 = arith.index_cast %14 : i32 to index
    %c0_11 = arith.constant 0 : index
    %29 = vector.load %arg9[%28, %c0_11] : memref<256x128xbf16, #tpu.memory_space<vmem>>, vector<128x128xbf16>
    %cst = arith.constant dense<0.000000e+00> : vector<128x128xf32>
    %30 = tpu.matmul %27, %29, %cst {dimension_numbers = #tpu.dot_dimension_numbers<[1], [0], [0], [1], [0, 0, 1, 1], [], []>} : vector<128x128xbf16>, vector<128x128xbf16>, vector<128x128xf32> -> vector<128x128xf32>
    %c0_i32_12 = arith.constant 0 : i32
    %31 = arith.cmpi eq, %arg2, %c0_i32_12 : i32
    %32 = arith.extui %31 : i1 to i32
    %c0_i32_13 = arith.constant 0 : i32
    %33 = arith.cmpi ne, %32, %c0_i32_13 : i32
    scf.if %33 {
      %34 = arith.truncf %30 : vector<128x128xf32> to vector<128x128xbf16>
      %c0_14 = arith.constant 0 : index
      %c0_15 = arith.constant 0 : index
      %c0_16 = arith.constant 0 : index
      %35 = vector.load %arg5[%c0_14, %c0_15, %c0_16] : memref<1x128x128xbf16, #tpu.memory_space<vmem>>, vector<1x128x128xbf16>
      %36 = vector.shape_cast %35 : vector<1x128x128xbf16> to vector<128x128xbf16>
      %cst_17 = arith.constant dense<0.000000e+00> : vector<128x128xf32>
      %37 = tpu.matmul %34, %36, %cst_17 {dimension_numbers = #tpu.dot_dimension_numbers<[1], [0], [0], [1], [0, 0, 1, 1], [], []>} : vector<128x128xbf16>, vector<128x128xbf16>, vector<128x128xf32> -> vector<128x128xf32>
      %c0_18 = arith.constant 0 : index
      %c0_19 = arith.constant 0 : index
      %c0_20 = arith.constant 0 : index
      %38 = vector.load %arg6[%c0_18, %c0_19, %c0_20] : memref<1x1x128xf32, #tpu.memory_space<vmem>>, vector<1x1x128xf32>
      %39 = vector.shape_cast %38 : vector<1x1x128xf32> to vector<1x128xf32>
      %40 = vector.broadcast %39 : vector<1x128xf32> to vector<128x128xf32>
      %41 = arith.addf %37, %40 : vector<128x128xf32>
      %c3_i32 = arith.constant 3 : i32
      %42 = arith.cmpi slt, %arg0, %c3_i32 : i32
      %43 = arith.extui %42 : i1 to i32
      %c0_i32_21 = arith.constant 0 : i32
      %44 = arith.cmpi ne, %43, %c0_i32_21 : i32
      scf.if %44 {
        %48 = arith.truncf %41 : vector<128x128xf32> to vector<128x128xbf16>
        %49 = arith.index_cast %18 : i32 to index
        %c0_24 = arith.constant 0 : index
        %50 = vector.load %arg9[%49, %c0_24] : memref<256x128xbf16, #tpu.memory_space<vmem>>, vector<128x128xbf16>
        tpu.vector_store %arg9[%49, %c0_24], %48 {strides = array<i32>} : memref<256x128xbf16, #tpu.memory_space<vmem>>, vector<128x128xbf16>,
      } else {
      }
      %c3_i32_22 = arith.constant 3 : i32
      %45 = arith.cmpi eq, %arg0, %c3_i32_22 : i32
      %46 = arith.extui %45 : i1 to i32
      %c0_i32_23 = arith.constant 0 : i32
      %47 = arith.cmpi ne, %46, %c0_i32_23 : i32
      scf.if %47 {
        %c0_24 = arith.constant 0 : index
        %c0_25 = arith.constant 0 : index
        %48 = vector.load %arg7[%c0_24, %c0_25] : memref<128x128xf32, #tpu.memory_space<vmem>>, vector<128x128xf32>
        tpu.vector_store %arg7[%c0_24, %c0_25], %41 {strides = array<i32>} : memref<128x128xf32, #tpu.memory_space<vmem>>, vector<128x128xf32>,
      } else {
      }
    } else {
    }
    return
  }
  func.func @transform_0(%arg0: i32, %arg1: i32, %arg2: i32) -> (i32, i32) {
    %c0_i32 = arith.constant 0 : i32
    %c0_i32_0 = arith.constant 0 : i32
    %c0_i32_1 = arith.constant 0 : i32
    return %c0_i32, %c0_i32_0 : i32, i32
  }
  func.func @transform_1(%arg0: i32, %arg1: i32, %arg2: i32) -> (i32, i32) {
    %c0_i32 = arith.constant 0 : i32
    %0 = arith.cmpi eq, %arg0, %c0_i32 : i32
    %c0_i32_0 = arith.constant 0 : i32
    %1 = arith.cmpi eq, %arg1, %c0_i32_0 : i32
    %2 = arith.andi %0, %1 : i1
    %c0_i32_1 = arith.constant 0 : i32
    %3 = arith.select %2, %arg2, %c0_i32_1 : i32
    %c0_i32_2 = arith.constant 0 : i32
    %c0_i32_3 = arith.constant 0 : i32
    return %3, %c0_i32_2 : i32, i32
  }
  func.func @transform_2(%arg0: i32, %arg1: i32, %arg2: i32) -> (i32, i32, i32) {
    %c0_i32 = arith.constant 0 : i32
    %c0_i32_0 = arith.constant 0 : i32
    %c0_i32_1 = arith.constant 0 : i32
    return %arg0, %c0_i32, %c0_i32_0 : i32, i32, i32
  }
  func.func @transform_3(%arg0: i32, %arg1: i32, %arg2: i32) -> (i32, i32, i32) {
    %c0_i32 = arith.constant 0 : i32
    %c0_i32_0 = arith.constant 0 : i32
    %c0_i32_1 = arith.constant 0 : i32
    return %arg0, %c0_i32, %c0_i32_0 : i32, i32, i32
  }
  func.func @transform_4(%arg0: i32, %arg1: i32, %arg2: i32) -> (i32, i32) {
    %c3_i32 = arith.constant 3 : i32
    %0 = arith.cmpi eq, %arg0, %c3_i32 : i32
    %c0_i32 = arith.constant 0 : i32
    %1 = arith.select %0, %arg1, %c0_i32 : i32
    %c0_i32_0 = arith.constant 0 : i32
    %c0_i32_1 = arith.constant 0 : i32
    return %1, %c0_i32_0 : i32, i32
  }
}

</mosaic_0001>

<llo_original>
// kernel: gnn_forward.1
$region0: #{gnn_forward.1}
  #allocation0 [shape = 'u32[]', space=smem, size = 0x4, offset = 0x4, fixed_abs, tag = 'smem constant byte address 0x4 - core index']
  #allocation1 [shape = 'u32[72,128]{1,0:T(1,128)}', space=vmem, size = 0x9000, scoped, tag = 'internal scratch']
  #allocation2 [shape = 'f32[128,128]{1,0:T(8,128)}', space=vmem, size = 0x10000, scoped, tag = 'scratch operand']
  #allocation3 [shape = 'bf16[256,128]{1,0:T(8,128)(2,1)}', space=vmem, size = 0x10000, scoped, tag = 'scratch operand']
  %s0 = inlined_call_operand.vmem [shape: bf16[128,128], index: 0, kind: input, shape index: {}]
  %s1 = inlined_call_operand.vmem [shape: bf16[128,128], index: 1, kind: input, shape index: {}]
  %s2 = inlined_call_operand.vmem [shape: bf16[4,128,128], index: 2, kind: input, shape index: {}]
  %s3 = inlined_call_operand.vmem [shape: f32[4,1,128], index: 3, kind: input, shape index: {}]
  %s4 = inlined_call_operand.vmem [shape: f32[128,128], index: 4, kind: output, shape index: {}]
  %s5 = sld [smem:[#allocation0]]
  $region65: #{gnn_forward.1} parent=0
    _
  %s7 = ssub.s32 1, %s5
  %s8 = scalar_select 0, %s7, %s5
  loop: start=0, step=1, limit=6
  $region2: #{gnn_forward.1} parent=0 // loop_pre_header
    _
  $region3: #{gnn_forward.1} parent=0 // loop_header
    %s10 = sphi 0, %s14
    %p11 = scmp.ge.s32.totalorder %s10, 6
    %s17 = sphi 0, %s36
    %s18 = sphi 0, %s32
    %s19 = sphi 0, %s28
    %s20 = sphi 0, %s17
    %s21 = sphi 0, %s18
    %s22 = sphi 0, %s19
    %s23 = sphi 0, %s20
    %s24 = sphi 0, %s21
    %s25 = sphi 0, %s22
    %s37 = sphi 0, %s37
    %s39 = sphi 0, %s37
    %s40 = sphi 0, %s39
    %s54 = sphi 0, %s40
    %s70 = sphi 0, %s72
    %s73 = sphi 0, %s70
    %s74 = sphi 0, %s73
    %s90 = sphi 0, %s74
    %s96 = sphi 0, %s98
    %s99 = sphi 0, %s96
    %s100 = sphi 0, %s99
    %s116 = sphi 0, %s100
    %s122 = sphi 0, %s124
    %s125 = sphi 0, %s122
    %s126 = sphi 0, %s125
    %s142 = sphi 0, %s126
    %s152 = sphi 0, %s154
    %s155 = sphi 0, %s152
    %s156 = sphi 0, %s155
    %s172 = sphi 0, %s156
  $region4: #{gnn_forward.1} parent=0 // loop_header_branch
    %13 = sbr.rel (%p11) target = $region8
  $region5: #{gnn_forward.1} parent=0 // loop_body
    %s15 = ssub.s32 %s10, 1
    %s16 = ssub.s32 %s10, 2
    %s26 = sadd.s32 1, %s19
    %p27 = scmp.ge.s32.totalorder %s26, 1
    %s28 = scalar_select %p27, 0, %s26
    %s29 = sadd.s32 1, %s18
    %s30 = scalar_select %p27, %s29, %s18
    %p31 = scmp.ge.s32.totalorder %s30, 1
    %s32 = scalar_select %p31, 0, %s30
    %s33 = sadd.s32 1, %s17
    %s34 = scalar_select %p31, %s33, %s17
    %p35 = scmp.ge.s32.totalorder %s34, 4
    %s36 = scalar_select %p35, 0, %s34
    %s38 = sadd.s32 %s37, 1
    %p41 = scmp.eq.s32.totalorder %s10, 3
    %p42 = scmp.ne.s32.totalorder %s37, %s39
    %p43 = scmp.eq.s32.totalorder %s10, 0
    %p44 = por %p42, %p43
    %p45 = scmp.ne.s32.totalorder %s37, %s39
    %p46 = scmp.eq.s32.totalorder %s15, 3
    %p47 = por %p45, %p46
    %p48 = scmp.ne.s32.totalorder %s39, %s40
    %p49 = scmp.eq.s32.totalorder %s15, 0
    %p50 = por %p48, %p49
    %p51 = scmp.ne.s32.totalorder %s39, %s40
    %p52 = scmp.eq.s32.totalorder %s16, 3
    %p53 = por %p51, %p52
    %p55 = scmp.ne.s32.totalorder %s40, %s54
    %p56 = scmp.eq.s32.totalorder %s16, 0
    %p57 = por %p55, %p56
    %p58 = scmp.eq.s32.totalorder %s17, 0
    %p59 = scmp.eq.s32.totalorder %s18, 0
    %p60 = pnand %p58, %p59
    %p61 = pneg %p60
    %s62 = scalar_select %p61, %s19, 0
    %p63 = scmp.eq.s32.totalorder %s36, 0
    %p64 = scmp.eq.s32.totalorder %s32, 0
    %p65 = pnand %p63, %p64
    %p66 = pneg %p65
    %s67 = scalar_select %p66, %s28, 0
    %s68 = ssub.s32 %s62, %s67
    %p69 = scmp.eq.s32.totalorder %s68, 0
    %s71 = sadd.s32 %s70, 1
    %s72 = scalar_select %p69, %s70, %s71
    %p75 = pneg %p69
    %p76 = scmp.eq.s32.totalorder %s10, 3
    %p77 = por %p75, %p76
    %p78 = scmp.ne.s32.totalorder %s70, %s73
    %p79 = scmp.eq.s32.totalorder %s10, 0
    %p80 = por %p78, %p79
    %p81 = scmp.ne.s32.totalorder %s70, %s73
    %p82 = scmp.eq.s32.totalorder %s15, 3
    %p83 = por %p81, %p82
    %p84 = scmp.ne.s32.totalorder %s73, %s74
    %p85 = scmp.eq.s32.totalorder %s15, 0
    %p86 = por %p84, %p85
    %p87 = scmp.ne.s32.totalorder %s73, %s74
    %p88 = scmp.eq.s32.totalorder %s16, 3
    %p89 = por %p87, %p88
    %p91 = scmp.ne.s32.totalorder %s74, %s90
    %p92 = scmp.eq.s32.totalorder %s16, 0
    %p93 = por %p91, %p92
    %s94 = ssub.s32 %s17, %s36
    %p95 = scmp.eq.s32.totalorder %s94, 0
    %s97 = sadd.s32 %s96, 1
    %s98 = scalar_select %p95, %s96, %s97
    %p101 = pneg %p95
    %p102 = scmp.eq.s32.totalorder %s10, 3
    %p103 = por %p101, %p102
    %p104 = scmp.ne.s32.totalorder %s96, %s99
    %p105 = scmp.eq.s32.totalorder %s10, 0
    %p106 = por %p104, %p105
    %p107 = scmp.ne.s32.totalorder %s96, %s99
    %p108 = scmp.eq.s32.totalorder %s15, 3
    %p109 = por %p107, %p108
    %p110 = scmp.ne.s32.totalorder %s99, %s100
    %p111 = scmp.eq.s32.totalorder %s15, 0
    %p112 = por %p110, %p111
    %p113 = scmp.ne.s32.totalorder %s99, %s100
    %p114 = scmp.eq.s32.totalorder %s16, 3
    %p115 = por %p113, %p114
    %p117 = scmp.ne.s32.totalorder %s100, %s116
    %p118 = scmp.eq.s32.totalorder %s16, 0
    %p119 = por %p117, %p118
    %s120 = ssub.s32 %s17, %s36
    %p121 = scmp.eq.s32.totalorder %s120, 0
    %s123 = sadd.s32 %s122, 1
    %s124 = scalar_select %p121, %s122, %s123
    %p127 = pneg %p121
    %p128 = scmp.eq.s32.totalorder %s10, 3
    %p129 = por %p127, %p128
    %p130 = scmp.ne.s32.totalorder %s122, %s125
    %p131 = scmp.eq.s32.totalorder %s10, 0
    %p132 = por %p130, %p131
    %p133 = scmp.ne.s32.totalorder %s122, %s125
    %p134 = scmp.eq.s32.totalorder %s15, 3
    %p135 = por %p133, %p134
    %p136 = scmp.ne.s32.totalorder %s125, %s126
    %p137 = scmp.eq.s32.totalorder %s15, 0
    %p138 = por %p136, %p137
    %p139 = scmp.ne.s32.totalorder %s125, %s126
    %p140 = scmp.eq.s32.totalorder %s16, 3
    %p141 = por %p139, %p140
    %p143 = scmp.ne.s32.totalorder %s126, %s142
    %p144 = scmp.eq.s32.totalorder %s16, 0
    %p145 = por %p143, %p144
    %p146 = scmp.eq.s32.totalorder %s17, 3
    %s147 = scalar_select %p146, %s18, 0
    %p148 = scmp.eq.s32.totalorder %s36, 3
    %s149 = scalar_select %p148, %s32, 0
    %s150 = ssub.s32 %s147, %s149
    %p151 = scmp.eq.s32.totalorder %s150, 0
    %s153 = sadd.s32 %s152, 1
    %s154 = scalar_select %p151, %s152, %s153
    %p157 = pneg %p151
    %p158 = scmp.eq.s32.totalorder %s10, 3
    %p159 = por %p157, %p158
    %p160 = scmp.ne.s32.totalorder %s152, %s155
    %p161 = scmp.eq.s32.totalorder %s10, 0
    %p162 = por %p160, %p161
    %p163 = scmp.ne.s32.totalorder %s152, %s155
    %p164 = scmp.eq.s32.totalorder %s15, 3
    %p165 = por %p163, %p164
    %p166 = scmp.ne.s32.totalorder %s155, %s156
    %p167 = scmp.eq.s32.totalorder %s15, 0
    %p168 = por %p166, %p167
    %p169 = scmp.ne.s32.totalorder %s155, %s156
    %p170 = scmp.eq.s32.totalorder %s16, 3
    %p171 = por %p169, %p170
    %p173 = scmp.ne.s32.totalorder %s156, %s172
    %p174 = scmp.eq.s32.totalorder %s16, 0
    %p175 = por %p173, %p174
    %p176 = scmp.le.s32.totalorder 1, %s10
    %p177 = scmp.lt.s32.totalorder %s10, 5
    %p178 = pnand %p176, %p177
    %p179 = pneg %p178
    // Predicated region
    $region9: #{gnn_forward.1} parent=5 // pred_check
      _
    $region10: #{gnn_forward.1} parent=5 // pred_check_branch
      %181 = sbr.rel (%p178) target = $region12
    $region11: #{gnn_forward.1} parent=5 // pred_region
      %s182 = ssub.s32 %s10, 1
      // Predicated region
      $region13: #{gnn_forward.1} parent=11 // pred_check
        %p183 = pneg %p50
      $region14: #{gnn_forward.1} parent=11 // pred_check_branch
        %185 = sbr.rel (%p183) target = $region16
      $region15: #{gnn_forward.1} parent=11 // pred_region
        _
      $region16: #{gnn_forward.1} parent=11 // pred_fallthru
        _
    $region12: #{gnn_forward.1} parent=5 // pred_fallthru
      _
    %p186 = scmp.lt.s32.totalorder %s10, 4
    // Predicated region
    $region17: #{gnn_forward.1} parent=5 // pred_check
      %p187 = pneg %p186
    $region18: #{gnn_forward.1} parent=5 // pred_check_branch
      %189 = sbr.rel (%p187) target = $region20
    $region19: #{gnn_forward.1} parent=5 // pred_region
      // Predicated region
      $region21: #{gnn_forward.1} parent=19 // pred_check
        %p190 = pneg %p80
      $region22: #{gnn_forward.1} parent=19 // pred_check_branch
        %192 = sbr.rel (%p190) target = $region24
      $region23: #{gnn_forward.1} parent=19 // pred_region
        %p193 = scmp.eq.s32.totalorder %s17, 0
        %p194 = scmp.eq.s32.totalorder %s18, 0
        %p195 = pnand %p193, %p194
        %p196 = pneg %p195
        %s197 = scalar_select %p196, %s19, 0
        %s198 = smul.u32 16, %s197
        %p199 = scmp.lt.s32.totalorder %s198, 15
        %s200 = scalar_select %p199, %s198, 15
        %s201 = smul.addr %s200, 4
        %s202 = scalar_lea.vmem %s1, %s201
        %p203 = scmp.eq.s32.totalorder %s17, 0
        %p204 = scmp.eq.s32.totalorder %s18, 0
        %p205 = pnand %p203, %p204
        %p206 = pneg %p205
        %s207 = scalar_select %p206, %s19, 0
        %s208 = smul.u32 16, %s207
      $region24: #{gnn_forward.1} parent=19 // pred_fallthru
        _
      // Predicated region
      $region25: #{gnn_forward.1} parent=19 // pred_check
        %p209 = pneg %p106
      $region26: #{gnn_forward.1} parent=19 // pred_check_branch
        %211 = sbr.rel (%p209) target = $region28
      $region27: #{gnn_forward.1} parent=19 // pred_region
        %p212 = scmp.lt.s32.totalorder %s17, 3
        %s213 = scalar_select %p212, %s17, 3
        %s214 = smul.addr %s213, 16
        %s215 = smul.addr %s214, 4
        %s216 = scalar_lea.vmem %s2, %s215
      $region28: #{gnn_forward.1} parent=19 // pred_fallthru
        _
      // Predicated region
      $region29: #{gnn_forward.1} parent=19 // pred_check
        %p217 = pneg %p132
      $region30: #{gnn_forward.1} parent=19 // pred_check_branch
        %219 = sbr.rel (%p217) target = $region32
      $region31: #{gnn_forward.1} parent=19 // pred_region
        %p220 = scmp.lt.s32.totalorder %s17, 3
        %s221 = scalar_select %p220, %s17, 3
        %s222 = scalar_lea.vmem %s3, %s221
      $region32: #{gnn_forward.1} parent=19 // pred_fallthru
        _
    $region20: #{gnn_forward.1} parent=5 // pred_fallthru
      _
    %p223 = scmp.le.s32.totalorder 1, %s10
    %p224 = scmp.lt.s32.totalorder %s10, 5
    %p225 = pnand %p223, %p224
    %p226 = pneg %p225
    // Predicated region
    $region33: #{gnn_forward.1} parent=5 // pred_check
      _
    $region34: #{gnn_forward.1} parent=5 // pred_check_branch
      %228 = sbr.rel (%p225) target = $region36
    $region35: #{gnn_forward.1} parent=5 // pred_region
      %s229 = ssub.s32 %s10, 1
      %p230 = pneg %p50
      %p231 = pneg %p47
      %p232 = scmp.eq.s32.totalorder %s20, 0
      %p233 = scmp.eq.s32.totalorder %s21, 0
      %p234 = pnand %p232, %p233
      %p235 = pneg %p234
      %s236 = scalar_select %p235, %s22, 0
      %s237 = smul.u32 16, %s236
      %p238 = scmp.lt.s32.totalorder %s237, 15
      %s239 = scalar_select %p238, %s237, 15
      %s240 = smul.addr %s239, 4
      %s241 = scalar_lea.vmem %s1, %s240
      %p242 = pneg %p86
      %p243 = pneg %p83
      %p244 = scmp.lt.s32.totalorder %s20, 3
      %s245 = scalar_select %p244, %s20, 3
      %s246 = smul.addr %s245, 16
      %s247 = smul.addr %s246, 4
      %s248 = scalar_lea.vmem %s2, %s247
      %p249 = pneg %p112
      %p250 = pneg %p109
      %p251 = scmp.lt.s32.totalorder %s20, 3
      %s252 = scalar_select %p251, %s20, 3
      %s253 = scalar_lea.vmem %s3, %s252
      %p254 = pneg %p138
      %p255 = pneg %p135
      %p256 = pneg %p168
      %p257 = pneg %p165
      %p258 = scmp.eq.s32.totalorder %s20, 3
      %s259 = scalar_select %p258, %s21, 0
      %s260 = smul.u32 16, %s259
      %p261 = scmp.lt.s32.totalorder %s260, 15
      %s262 = scalar_select %p261, %s260, 15
      %s263 = smul.addr %s262, 8
      %s264 = scalar_lea.vmem %s4, %s263
      %p265 = scmp.eq.s32.totalorder %s20, 0
      %p266 = scmp.eq.s32.totalorder %s21, 0
      %p267 = pnand %p265, %p266
      %p268 = pneg %p267
      %s269 = scalar_select %p268, %s22, 0
      %s270 = smul.u32 16, %s269
      %p271 = scmp.lt.s32.totalorder %s270, 15
      %s272 = scalar_select %p271, %s270, 15
      %s273 = smul.addr %s272, 4
      %s274 = scalar_lea.vmem %s1, %s273
      %p275 = scmp.eq.s32.totalorder %s20, 0
      %p276 = scmp.eq.s32.totalorder %s21, 0
      %p277 = pnand %p275, %p276
      %p278 = pneg %p277
      %s279 = scalar_select %p278, %s22, 0
      %s280 = smul.u32 16, %s279
      %p281 = scmp.lt.s32.totalorder %s20, 3
      %s282 = scalar_select %p281, %s20, 3
      %s283 = smul.addr %s282, 16
      %s284 = smul.addr %s283, 4
      %s285 = scalar_lea.vmem %s2, %s284
      %p286 = scmp.lt.s32.totalorder %s20, 3
      %s287 = scalar_select %p286, %s20, 3
      %s288 = scalar_lea.vmem %s3, %s287
      %p289 = scmp.eq.s32.totalorder %s20, 3
      %s290 = scalar_select %p289, %s21, 0
      %s291 = smul.u32 16, %s290
      %p292 = scmp.lt.s32.totalorder %s291, 15
      %s293 = scalar_select %p292, %s291, 15
      %s294 = smul.addr %s293, 8
      %s295 = scalar_lea.vmem %s4, %s294
      %p296 = scmp.eq.s32.totalorder %s20, 3
      %s297 = scalar_select %p296, %s21, 0
      %s298 = smul.u32 16, %s297
      %p299 = scmp.lt.s32.totalorder %s20, 0
      %s300 = ssub.s32 0, %s20
      %s301 = scalar_select %p299, %s300, %s20
      %s302 = sand.u32 %s301, 1
      %s303 = ssub.s32 0, %s302
      %s304 = scalar_select %p299, %s303, %s302
      %p305 = scmp.ne.s32.totalorder %s304, 0
      %p306 = scmp.lt.s32.totalorder %s304, 0
      %p307 = pnand %p306, %p305
      %p308 = pneg %p307
      %s309 = sadd.s32 %s304, 2
      %s310 = scalar_select %p308, %s309, %s304
      %s311 = ssub.s32 1, %s310
      %s312 = smul.u32 %s311, 128
      %s313 = smul.u32 %s22, 128
      %s314 = sadd.s32 %s312, %s313
      %s315 = smul.u32 %s310, 128
      %s316 = smul.u32 %s21, 128
      %s317 = sadd.s32 %s315, %s316
      %p318 = scmp.eq.s32.totalorder %s20, 0
      %p319 = scmp.eq.s32.totalorder %s21, 0
      %p320 = pnand %p318, %p319
      %p321 = pneg %p320
      // Predicated region
      $region37: #{gnn_forward.1} parent=35 // pred_check
        _
      $region38: #{gnn_forward.1} parent=35 // pred_check_branch
        %323 = sbr.rel (%p320) target = $region40
      $region39: #{gnn_forward.1} parent=35 // pred_region
        %v324 = vld [vmem:[%s274] sm:$0xf]
        %v325 = vld [vmem:[%s274 + $0x4] sm:$0xf]
        %v326 = vld [vmem:[%s274 + $0x8] sm:$0xf]
        %v327 = vld [vmem:[%s274 + $0xc] sm:$0xf]
        %v328 = vld [vmem:[%s274 + $0x10] sm:$0xf]
        %v329 = vld [vmem:[%s274 + $0x14] sm:$0xf]
        %v330 = vld [vmem:[%s274 + $0x18] sm:$0xf]
        %v331 = vld [vmem:[%s274 + $0x1c] sm:$0xf]
        %v332 = vld [vmem:[%s274 + $0x20] sm:$0xf]
        %v333 = vld [vmem:[%s274 + $0x24] sm:$0xf]
        %v334 = vld [vmem:[%s274 + $0x28] sm:$0xf]
        %v335 = vld [vmem:[%s274 + $0x2c] sm:$0xf]
        %v336 = vld [vmem:[%s274 + $0x30] sm:$0xf]
        %v337 = vld [vmem:[%s274 + $0x34] sm:$0xf]
        %v338 = vld [vmem:[%s274 + $0x38] sm:$0xf]
        %v339 = vld [vmem:[%s274 + $0x3c] sm:$0xf]
        %s340 = sshra.s32 %s314, 3
        %s341 = sand.u32 %s314, 7
        %s342 = smul.addr %s340, 4
        %s343 = scalar_lea.vmem [#allocation3], %s342
        %344 = vst [vmem:[%s343] sm:$0xf] %v324
        %345 = vst [vmem:[%s343 + $0x4] sm:$0xf] %v325
        %346 = vst [vmem:[%s343 + $0x8] sm:$0xf] %v326
        %347 = vst [vmem:[%s343 + $0xc] sm:$0xf] %v327
        %348 = vst [vmem:[%s343 + $0x10] sm:$0xf] %v328
        %349 = vst [vmem:[%s343 + $0x14] sm:$0xf] %v329
        %350 = vst [vmem:[%s343 + $0x18] sm:$0xf] %v330
        %351 = vst [vmem:[%s343 + $0x1c] sm:$0xf] %v331
        %352 = vst [vmem:[%s343 + $0x20] sm:$0xf] %v332
        %353 = vst [vmem:[%s343 + $0x24] sm:$0xf] %v333
        %354 = vst [vmem:[%s343 + $0x28] sm:$0xf] %v334
        %355 = vst [vmem:[%s343 + $0x2c] sm:$0xf] %v335
        %356 = vst [vmem:[%s343 + $0x30] sm:$0xf] %v336
        %357 = vst [vmem:[%s343 + $0x34] sm:$0xf] %v337
        %358 = vst [vmem:[%s343 + $0x38] sm:$0xf] %v338
        %359 = vst [vmem:[%s343 + $0x3c] sm:$0xf] %v339
      $region40: #{gnn_forward.1} parent=35 // pred_fallthru
        _
      %s360 = sshra.s32 %s316, 3
      %s361 = sand.u32 %s316, 7
      %s362 = smul.addr %s360, 4
      %s363 = scalar_lea.vmem %s0, %s362
      %v364 = vld [vmem:[%s363] sm:$0xf]
      %v365 = vld [vmem:[%s363 + $0x4] sm:$0xf]
      %v366 = vld [vmem:[%s363 + $0x8] sm:$0xf]
      %v367 = vld [vmem:[%s363 + $0xc] sm:$0xf]
      %v368 = vld [vmem:[%s363 + $0x10] sm:$0xf]
      %v369 = vld [vmem:[%s363 + $0x14] sm:$0xf]
      %v370 = vld [vmem:[%s363 + $0x18] sm:$0xf]
      %v371 = vld [vmem:[%s363 + $0x1c] sm:$0xf]
      %v372 = vld [vmem:[%s363 + $0x20] sm:$0xf]
      %v373 = vld [vmem:[%s363 + $0x24] sm:$0xf]
      %v374 = vld [vmem:[%s363 + $0x28] sm:$0xf]
      %v375 = vld [vmem:[%s363 + $0x2c] sm:$0xf]
      %v376 = vld [vmem:[%s363 + $0x30] sm:$0xf]
      %v377 = vld [vmem:[%s363 + $0x34] sm:$0xf]
      %v378 = vld [vmem:[%s363 + $0x38] sm:$0xf]
      %v379 = vld [vmem:[%s363 + $0x3c] sm:$0xf]
      %s380 = sshra.s32 %s314, 3
      %s381 = sand.u32 %s314, 7
      %s382 = smul.addr %s380, 4
      %s383 = scalar_lea.vmem [#allocation3], %s382
      %v384 = vld [vmem:[%s383] sm:$0xf]
      %v385 = vld [vmem:[%s383 + $0x4] sm:$0xf]
      %v386 = vld [vmem:[%s383 + $0x8] sm:$0xf]
      %v387 = vld [vmem:[%s383 + $0xc] sm:$0xf]
      %v388 = vld [vmem:[%s383 + $0x10] sm:$0xf]
      %v389 = vld [vmem:[%s383 + $0x14] sm:$0xf]
      %v390 = vld [vmem:[%s383 + $0x18] sm:$0xf]
      %v391 = vld [vmem:[%s383 + $0x1c] sm:$0xf]
      %v392 = vld [vmem:[%s383 + $0x20] sm:$0xf]
      %v393 = vld [vmem:[%s383 + $0x24] sm:$0xf]
      %v394 = vld [vmem:[%s383 + $0x28] sm:$0xf]
      %v395 = vld [vmem:[%s383 + $0x2c] sm:$0xf]
      %v396 = vld [vmem:[%s383 + $0x30] sm:$0xf]
      %v397 = vld [vmem:[%s383 + $0x34] sm:$0xf]
      %v398 = vld [vmem:[%s383 + $0x38] sm:$0xf]
      %v399 = vld [vmem:[%s383 + $0x3c] sm:$0xf]
      %v416 = vunpack.c.l.b16 %v364
      %v417 = vunpack.c.l.b16 %v365
      %v418 = vunpack.c.l.b16 %v366
      %v419 = vunpack.c.l.b16 %v367
      %v420 = vunpack.c.l.b16 %v368
      %v421 = vunpack.c.l.b16 %v369
      %v422 = vunpack.c.l.b16 %v370
      %v423 = vunpack.c.l.b16 %v371
      %v424 = vunpack.c.l.b16 %v372
      %v425 = vunpack.c.l.b16 %v373
      %v426 = vunpack.c.l.b16 %v374
      %v427 = vunpack.c.l.b16 %v375
      %v428 = vunpack.c.l.b16 %v376
      %v429 = vunpack.c.l.b16 %v377
      %v430 = vunpack.c.l.b16 %v378
      %v431 = vunpack.c.l.b16 %v379
      %v432 = vpack.c.b16 %v417, %v416
      %v433 = vpack.c.b16 %v419, %v418
      %v434 = vpack.c.b16 %v421, %v420
      %v435 = vpack.c.b16 %v423, %v422
      %v436 = vpack.c.b16 %v425, %v424
      %v437 = vpack.c.b16 %v427, %v426
      %v438 = vpack.c.b16 %v429, %v428
      %v439 = vpack.c.b16 %v431, %v430
      %v464 = vunpack.c.l.b16 %v384
      %v465 = vunpack.c.l.b16 %v385
      %v466 = vunpack.c.l.b16 %v386
      %v467 = vunpack.c.l.b16 %v387
      %v468 = vunpack.c.l.b16 %v388
      %v469 = vunpack.c.l.b16 %v389
      %v470 = vunpack.c.l.b16 %v390
      %v471 = vunpack.c.l.b16 %v391
      %v472 = vunpack.c.l.b16 %v392
      %v473 = vunpack.c.l.b16 %v393
      %v474 = vunpack.c.l.b16 %v394
      %v475 = vunpack.c.l.b16 %v395
      %v476 = vunpack.c.l.b16 %v396
      %v477 = vunpack.c.l.b16 %v397
      %v478 = vunpack.c.l.b16 %v398
      %v479 = vunpack.c.l.b16 %v399
      %v480 = vpack.c.b16 %v465, %v464
      %v481 = vpack.c.b16 %v467, %v466
      %v482 = vpack.c.b16 %v469, %v468
      %v483 = vpack.c.b16 %v471, %v470
      %v484 = vpack.c.b16 %v473, %v472
      %v485 = vpack.c.b16 %v475, %v474
      %v486 = vpack.c.b16 %v477, %v476
      %v487 = vpack.c.b16 %v479, %v478
      %496 = vmatpush.bf16.msra.mxu0 %v487
      %497 = vmatpush.bf16.msra.mxu0 %v486
      %498 = vmatpush.bf16.msra.mxu0 %v485
      %499 = vmatpush.bf16.msra.mxu0 %v484
      %500 = vmatpush.bf16.msra.mxu0 %v483
      %501 = vmatpush.bf16.msra.mxu0 %v482
      %502 = vmatpush.bf16.msra.mxu0 %v481
      %503 = vmatpush.bf16.msra.mxu0 %v480
      %504 = vmatmul.bf16.gmra.mxu0 %v432
      %v505 = vpop.f32.mrf.mxu0
      %v506 = vadd.f32 0.0, %v505
      %v507 = vpop.f32.mrf.mxu0
      %v508 = vadd.f32 0.0, %v507
      %509 = vmatmul.bf16.gmra.mxu0 %v433
      %v510 = vpop.f32.mrf.mxu0
      %v511 = vadd.f32 0.0, %v510
      %v512 = vpop.f32.mrf.mxu0
      %v513 = vadd.f32 0.0, %v512
      %514 = vmatmul.bf16.gmra.mxu0 %v434
      %v515 = vpop.f32.mrf.mxu0
      %v516 = vadd.f32 0.0, %v515
      %v517 = vpop.f32.mrf.mxu0
      %v518 = vadd.f32 0.0, %v517
      %519 = vmatmul.bf16.gmra.mxu0 %v435
      %v520 = vpop.f32.mrf.mxu0
      %v521 = vadd.f32 0.0, %v520
      %v522 = vpop.f32.mrf.mxu0
      %v523 = vadd.f32 0.0, %v522
      %524 = vmatmul.bf16.gmra.mxu0 %v436
      %v525 = vpop.f32.mrf.mxu0
      %v526 = vadd.f32 0.0, %v525
      %v527 = vpop.f32.mrf.mxu0
      %v528 = vadd.f32 0.0, %v527
      %529 = vmatmul.bf16.gmra.mxu0 %v437
      %v530 = vpop.f32.mrf.mxu0
      %v531 = vadd.f32 0.0, %v530
      %v532 = vpop.f32.mrf.mxu0
      %v533 = vadd.f32 0.0, %v532
      %534 = vmatmul.bf16.gmra.mxu0 %v438
      %v535 = vpop.f32.mrf.mxu0
      %v536 = vadd.f32 0.0, %v535
      %v537 = vpop.f32.mrf.mxu0
      %v538 = vadd.f32 0.0, %v537
      %539 = vmatmul.bf16.gmra.mxu0 %v439
      %v540 = vpop.f32.mrf.mxu0
      %v541 = vadd.f32 0.0, %v540
      %v542 = vpop.f32.mrf.mxu0
      %v543 = vadd.f32 0.0, %v542
      %544 = vdwg.mxu0
      %p545 = scmp.eq.s32.totalorder %s22, 0
      // Predicated region
      $region41: #{gnn_forward.1} parent=35 // pred_check
        %p546 = pneg %p545
      $region42: #{gnn_forward.1} parent=35 // pred_check_branch
        %548 = sbr.rel (%p546) target = $region44
      $region43: #{gnn_forward.1} parent=35 // pred_region
        %v549 = vpack.c.bf16 %v508, %v506
        %v550 = vpack.c.bf16 %v513, %v511
        %v551 = vpack.c.bf16 %v518, %v516
        %v552 = vpack.c.bf16 %v523, %v521
        %v553 = vpack.c.bf16 %v528, %v526
        %v554 = vpack.c.bf16 %v533, %v531
        %v555 = vpack.c.bf16 %v538, %v536
        %v556 = vpack.c.bf16 %v543, %v541
        %v557 = vld [vmem:[%s285] sm:$0xf]
        %v558 = vld [vmem:[%s285 + $0x4] sm:$0xf]
        %v559 = vld [vmem:[%s285 + $0x8] sm:$0xf]
        %v560 = vld [vmem:[%s285 + $0xc] sm:$0xf]
        %v561 = vld [vmem:[%s285 + $0x10] sm:$0xf]
        %v562 = vld [vmem:[%s285 + $0x14] sm:$0xf]
        %v563 = vld [vmem:[%s285 + $0x18] sm:$0xf]
        %v564 = vld [vmem:[%s285 + $0x1c] sm:$0xf]
        %v565 = vld [vmem:[%s285 + $0x20] sm:$0xf]
        %v566 = vld [vmem:[%s285 + $0x24] sm:$0xf]
        %v567 = vld [vmem:[%s285 + $0x28] sm:$0xf]
        %v568 = vld [vmem:[%s285 + $0x2c] sm:$0xf]
        %v569 = vld [vmem:[%s285 + $0x30] sm:$0xf]
        %v570 = vld [vmem:[%s285 + $0x34] sm:$0xf]
        %v571 = vld [vmem:[%s285 + $0x38] sm:$0xf]
        %v572 = vld [vmem:[%s285 + $0x3c] sm:$0xf]
        %v573 = vld [vmem:[%s288] sm:$0x1]
        %v575 = vperm.slane %v573, 0
        %v593 = vunpack.c.l.b16 %v557
        %v594 = vunpack.c.l.b16 %v558
        %v595 = vunpack.c.l.b16 %v559
        %v596 = vunpack.c.l.b16 %v560
        %v597 = vunpack.c.l.b16 %v561
        %v598 = vunpack.c.l.b16 %v562
        %v599 = vunpack.c.l.b16 %v563
        %v600 = vunpack.c.l.b16 %v564
        %v601 = vunpack.c.l.b16 %v565
        %v602 = vunpack.c.l.b16 %v566
        %v603 = vunpack.c.l.b16 %v567
        %v604 = vunpack.c.l.b16 %v568
        %v605 = vunpack.c.l.b16 %v569
        %v606 = vunpack.c.l.b16 %v570
        %v607 = vunpack.c.l.b16 %v571
        %v608 = vunpack.c.l.b16 %v572
        %v609 = vpack.c.b16 %v594, %v593
        %v610 = vpack.c.b16 %v596, %v595
        %v611 = vpack.c.b16 %v598, %v597
        %v612 = vpack.c.b16 %v600, %v599
        %v613 = vpack.c.b16 %v602, %v601
        %v614 = vpack.c.b16 %v604, %v603
        %v615 = vpack.c.b16 %v606, %v605
        %v616 = vpack.c.b16 %v608, %v607
        %625 = vmatpush.bf16.msra.mxu0 %v616
        %626 = vmatpush.bf16.msra.mxu0 %v615
        %627 = vmatpush.bf16.msra.mxu0 %v614
        %628 = vmatpush.bf16.msra.mxu0 %v613
        %629 = vmatpush.bf16.msra.mxu0 %v612
        %630 = vmatpush.bf16.msra.mxu0 %v611
        %631 = vmatpush.bf16.msra.mxu0 %v610
        %632 = vmatpush.bf16.msra.mxu0 %v609
        %633 = vmatmul.bf16.gmra.mxu0 %v549
        %v634 = vpop.f32.mrf.mxu0
        %v635 = vadd.f32 %v575, %v634
        %v636 = vpop.f32.mrf.mxu0
        %v637 = vadd.f32 %v575, %v636
        %638 = vmatmul.bf16.gmra.mxu0 %v550
        %v639 = vpop.f32.mrf.mxu0
        %v640 = vadd.f32 %v575, %v639
        %v641 = vpop.f32.mrf.mxu0
        %v642 = vadd.f32 %v575, %v641
        %643 = vmatmul.bf16.gmra.mxu0 %v551
        %v644 = vpop.f32.mrf.mxu0
        %v645 = vadd.f32 %v575, %v644
        %v646 = vpop.f32.mrf.mxu0
        %v647 = vadd.f32 %v575, %v646
        %648 = vmatmul.bf16.gmra.mxu0 %v552
        %v649 = vpop.f32.mrf.mxu0
        %v650 = vadd.f32 %v575, %v649
        %v651 = vpop.f32.mrf.mxu0
        %v652 = vadd.f32 %v575, %v651
        %653 = vmatmul.bf16.gmra.mxu0 %v553
        %v654 = vpop.f32.mrf.mxu0
        %v655 = vadd.f32 %v575, %v654
        %v656 = vpop.f32.mrf.mxu0
        %v657 = vadd.f32 %v575, %v656
        %658 = vmatmul.bf16.gmra.mxu0 %v554
        %v659 = vpop.f32.mrf.mxu0
        %v660 = vadd.f32 %v575, %v659
        %v661 = vpop.f32.mrf.mxu0
        %v662 = vadd.f32 %v575, %v661
        %663 = vmatmul.bf16.gmra.mxu0 %v555
        %v664 = vpop.f32.mrf.mxu0
        %v665 = vadd.f32 %v575, %v664
        %v666 = vpop.f32.mrf.mxu0
        %v667 = vadd.f32 %v575, %v666
        %668 = vmatmul.bf16.gmra.mxu0 %v556
        %v669 = vpop.f32.mrf.mxu0
        %v670 = vadd.f32 %v575, %v669
        %v671 = vpop.f32.mrf.mxu0
        %v672 = vadd.f32 %v575, %v671
        %673 = vdwg.mxu0
        %p674 = scmp.lt.s32.totalorder %s20, 3
        // Predicated region
        $region45: #{gnn_forward.1} parent=43 // pred_check
          %p675 = pneg %p674
        $region46: #{gnn_forward.1} parent=43 // pred_check_branch
          %677 = sbr.rel (%p675) target = $region48
        $region47: #{gnn_forward.1} parent=43 // pred_region
          %v678 = vpack.c.bf16 %v635, %v635
          %v679 = vpack.c.bf16 %v637, %v637
          %v680 = vpack.c.bf16 %v640, %v640
          %v681 = vpack.c.bf16 %v642, %v642
          %v682 = vpack.c.bf16 %v645, %v645
          %v683 = vpack.c.bf16 %v647, %v647
          %v684 = vpack.c.bf16 %v650, %v650
          %v685 = vpack.c.bf16 %v652, %v652
          %v686 = vpack.c.bf16 %v655, %v655
          %v687 = vpack.c.bf16 %v657, %v657
          %v688 = vpack.c.bf16 %v660, %v660
          %v689 = vpack.c.bf16 %v662, %v662
          %v690 = vpack.c.bf16 %v665, %v665
          %v691 = vpack.c.bf16 %v667, %v667
          %v692 = vpack.c.bf16 %v670, %v670
          %v693 = vpack.c.bf16 %v672, %v672
          %s694 = sshra.s32 %s317, 3
          %s695 = sand.u32 %s317, 7
          %s696 = smul.addr %s694, 4
          %s697 = scalar_lea.vmem [#allocation3], %s696
          %698 = vst [vmem:[%s697] sm:$0xf] %v678
          %699 = vst [vmem:[%s697 + $0x4] sm:$0xf] %v679
          %700 = vst [vmem:[%s697 + $0x8] sm:$0xf] %v680
          %701 = vst [vmem:[%s697 + $0xc] sm:$0xf] %v681
          %702 = vst [vmem:[%s697 + $0x10] sm:$0xf] %v682
          %703 = vst [vmem:[%s697 + $0x14] sm:$0xf] %v683
          %704 = vst [vmem:[%s697 + $0x18] sm:$0xf] %v684
          %705 = vst [vmem:[%s697 + $0x1c] sm:$0xf] %v685
          %706 = vst [vmem:[%s697 + $0x20] sm:$0xf] %v686
          %707 = vst [vmem:[%s697 + $0x24] sm:$0xf] %v687
          %708 = vst [vmem:[%s697 + $0x28] sm:$0xf] %v688
          %709 = vst [vmem:[%s697 + $0x2c] sm:$0xf] %v689
          %710 = vst [vmem:[%s697 + $0x30] sm:$0xf] %v690
          %711 = vst [vmem:[%s697 + $0x34] sm:$0xf] %v691
          %712 = vst [vmem:[%s697 + $0x38] sm:$0xf] %v692
          %713 = vst [vmem:[%s697 + $0x3c] sm:$0xf] %v693
        $region48: #{gnn_forward.1} parent=43 // pred_fallthru
          _
        %p714 = scmp.eq.s32.totalorder %s20, 3
        // Predicated region
        $region49: #{gnn_forward.1} parent=43 // pred_check
          %p715 = pneg %p714
        $region50: #{gnn_forward.1} parent=43 // pred_check_branch
          %717 = sbr.rel (%p715) target = $region52
        $region51: #{gnn_forward.1} parent=43 // pred_region
          %718 = vst [vmem:[%s295] sm:$0xff] %v635
          %719 = vst [vmem:[%s295 + $0x8] sm:$0xff] %v637
          %720 = vst [vmem:[%s295 + $0x10] sm:$0xff] %v640
          %721 = vst [vmem:[%s295 + $0x18] sm:$0xff] %v642
          %722 = vst [vmem:[%s295 + $0x20] sm:$0xff] %v645
          %723 = vst [vmem:[%s295 + $0x28] sm:$0xff] %v647
          %724 = vst [vmem:[%s295 + $0x30] sm:$0xff] %v650
          %725 = vst [vmem:[%s295 + $0x38] sm:$0xff] %v652
          %726 = vst [vmem:[%s295 + $0x40] sm:$0xff] %v655
          %727 = vst [vmem:[%s295 + $0x48] sm:$0xff] %v657
          %728 = vst [vmem:[%s295 + $0x50] sm:$0xff] %v660
          %729 = vst [vmem:[%s295 + $0x58] sm:$0xff] %v662
          %730 = vst [vmem:[%s295 + $0x60] sm:$0xff] %v665
          %731 = vst [vmem:[%s295 + $0x68] sm:$0xff] %v667
          %732 = vst [vmem:[%s295 + $0x70] sm:$0xff] %v670
          %733 = vst [vmem:[%s295 + $0x78] sm:$0xff] %v672
        $region52: #{gnn_forward.1} parent=43 // pred_fallthru
          _
      $region44: #{gnn_forward.1} parent=35 // pred_fallthru
        _
      %p734 = scmp.eq.s32.totalorder %s20, 3
      %s735 = scalar_select %p734, %s21, 0
      %s736 = smul.u32 16, %s735
      %p737 = scmp.lt.s32.totalorder %s736, 15
      %s738 = scalar_select %p737, %s736, 15
      %s739 = smul.addr %s738, 8
      %s740 = scalar_lea.vmem %s4, %s739
      // Predicated region
      $region53: #{gnn_forward.1} parent=35 // pred_check
        %p741 = pneg %p165
      $region54: #{gnn_forward.1} parent=35 // pred_check_branch
        %743 = sbr.rel (%p741) target = $region56
      $region55: #{gnn_forward.1} parent=35 // pred_region
        %p744 = scmp.eq.s32.totalorder %s20, 3
        %s745 = scalar_select %p744, %s21, 0
        %s746 = smul.u32 16, %s745
      $region56: #{gnn_forward.1} parent=35 // pred_fallthru
        _
    $region36: #{gnn_forward.1} parent=5 // pred_fallthru
      _
    %p747 = scmp.le.s32.totalorder 2, %s10
    // Predicated region
    $region57: #{gnn_forward.1} parent=5 // pred_check
      %p748 = pneg %p747
    $region58: #{gnn_forward.1} parent=5 // pred_check_branch
      %750 = sbr.rel (%p748) target = $region60
    $region59: #{gnn_forward.1} parent=5 // pred_region
      %s751 = ssub.s32 %s10, 2
      // Predicated region
      $region61: #{gnn_forward.1} parent=59 // pred_check
        %p752 = pneg %p171
      $region62: #{gnn_forward.1} parent=59 // pred_check_branch
        %754 = sbr.rel (%p752) target = $region64
      $region63: #{gnn_forward.1} parent=59 // pred_region
        %p755 = scmp.eq.s32.totalorder %s23, 3
        %s756 = scalar_select %p755, %s24, 0
        %s757 = smul.u32 16, %s756
        %p758 = scmp.lt.s32.totalorder %s757, 15
        %s759 = scalar_select %p758, %s757, 15
        %s760 = smul.addr %s759, 8
        %s761 = scalar_lea.vmem %s4, %s760
      $region64: #{gnn_forward.1} parent=59 // pred_fallthru
        _
    $region60: #{gnn_forward.1} parent=5 // pred_fallthru
      _
  $region6: #{gnn_forward.1} parent=0 // loop_footer
    %s14 = sadd.s32 1, %s10
  $region7: #{gnn_forward.1} parent=0 // loop_footer_branch
    %9 = sbr.rel target = $region3
  $region8: #{gnn_forward.1} parent=0 // loop_exit
    _

</llo_original>
